<compile_context>
chip_gen: v7x
topology: tpu7x:2x2x1
jax: 0.10.0
libtpu: 0.0.40
codegen_flags: <defaults>
</compile_context>

<pallas_src>
import jax
import jax.numpy as jnp
from jax import lax
from jax.experimental import pallas as pl
from jax.experimental.pallas import tpu as pltpu  # noqa: F401  (TPU-specific tuning hooks)


def conv1x1_sigmoid_kernel(x_ref, w_ref, b_ref, o_ref):
    # x_ref: (M, K) bf16 input rows.
    # w_ref: (K, C_out) bf16 weight in MXU-native layout (K on sublanes,
    #        C_out on lanes) -> no in-kernel transpose of the 442 KB weight.
    # b_ref: (1, C_out) f32 bias.
    # o_ref: (M, C_out) f32 output.
    acc = lax.dot_general(
        x_ref[...],
        w_ref[...],
        dimension_numbers=(((1,), (0,)), ((), ())),   # plain A @ B, f32 accumulate
        preferred_element_type=jnp.float32,
    )
    # f32 epilogue (bias + sigmoid), cast only at the final store.
    o_ref[...] = jax.nn.sigmoid(acc + b_ref[...]).astype(o_ref.dtype)


def prepare_conv_params(weight, bias):
    """One-time parameter prep (outside the jit / hot path).

    weight: (C_out, C_in, 1, 1) f32 in native PyTorch layout.
    bias:   (C_out,) f32.
    Returns (w_kc, b2d): bf16 (C_in, C_out) weight and f32 (1, C_out) bias.
    """
    c_out, c_in = weight.shape[0], weight.shape[1]
    w_kc = jnp.asarray(weight.reshape(c_out, c_in).T, dtype=jnp.bfloat16)  # (96, 2304)
    b2d = jnp.asarray(bias.reshape(1, c_out), dtype=jnp.float32)           # (1, 2304)
    return w_kc, b2d


def conv1x1_sigmoid(x_nchw, w_kc, b2d):
    """Fused 1x1 Conv2d + Sigmoid.

    x_nchw: (N, C_in, 1, 1) f32; w_kc: (C_in, C_out) bf16; b2d: (1, C_out) f32.
    Returns (N, C_out, 1, 1) f32.
    """
    n, c_in, h, w = x_nchw.shape
    assert h == 1 and w == 1, "this module only sees 1x1 spatial"
    k, c_out = w_kc.shape
    assert k == c_in

    m = n * h * w
    # Tiny (1, 96) input: cast to bf16 so both MXU operands share a dtype.
    x2d = x_nchw.reshape(m, c_in).astype(jnp.bfloat16)

    # Advisory cost model so XLA can schedule/overlap around this tiny
    # mem-bound custom call instead of treating it as opaque.
    bytes_accessed = (
        x2d.size * 2 + w_kc.size * 2 + b2d.size * 4 + m * c_out * 4
    )
    cost = pl.CostEstimate(
        flops=2 * m * c_in * c_out,
        transcendentals=m * c_out,            # one exp per sigmoid output
        bytes_accessed=bytes_accessed,
    )

    # Fully collapsed grid: single block per operand.  The whole bf16 weight
    # (~442 KB) plus everything else is < 1 MB, trivially inside VMEM on
    # v5e/v6e (128 MiB) and v7x (64 MiB); a grid would only add ~0.35 us/step
    # of overhead with nothing to hide (compute is nanoseconds on the MXU).
    out = pl.pallas_call(
        conv1x1_sigmoid_kernel,
        out_shape=jax.ShapeDtypeStruct((m, c_out), jnp.float32),
        in_specs=[
            pl.BlockSpec((m, c_in), lambda: (0, 0)),
            pl.BlockSpec((c_in, c_out), lambda: (0, 0)),
            pl.BlockSpec((1, c_out), lambda: (0, 0)),
        ],
        out_specs=pl.BlockSpec((m, c_out), lambda: (0, 0)),
        cost_estimate=cost,
    )(x2d, w_kc, b2d)

    return out.reshape(n, c_out, h, w)


if __name__ == "__main__":
    key = jax.random.PRNGKey(0)
    k_x, k_w, k_b = jax.random.split(key, 3)

    C_IN, C_OUT = 96, 2304
    # Deterministic synthetic parameters (shapes from Conv2d(96, 2304, 1, 1)).
    x = jax.random.normal(k_x, (1, C_IN, 1, 1), dtype=jnp.float32)
    weight = jax.random.normal(k_w, (C_OUT, C_IN, 1, 1), dtype=jnp.float32) * 0.05
    bias = jax.random.normal(k_b, (C_OUT,), dtype=jnp.float32) * 0.05

    # One-time parameter prep (bf16 + MXU-native layout), outside the hot path.
    w_kc, b2d = prepare_conv_params(weight, bias)

    y = conv1x1_sigmoid(x, w_kc, b2d)
    y = jax.block_until_ready(y)

    # Reference check in plain f32 JAX.  Tolerance relaxed because the kernel
    # stores weights/activations in bf16 (f32 accumulate + f32 epilogue).
    ref = jax.nn.sigmoid(
        jnp.einsum("nchw,oc->nohw", x, weight.reshape(C_OUT, C_IN))
        + bias.reshape(1, C_OUT, 1, 1)
    )
    assert y.shape == (1, C_OUT, 1, 1)
    assert jnp.allclose(y, ref, atol=2e-2, rtol=2e-2)

    # TODO(synk): in the full EfficientNet-V2 SE block this op should be fused
    # with the surrounding squeeze (avg-pool + FC1 + act) and excite multiply
    # in one pallas_call to amortize the ~1-2 us custom-call dispatch that
    # currently dominates this 0.3-1.1 us HBM-bound op.
    print("KERNEL_OK")
</pallas_src>

<mosaic_0001>
module attributes {stable_mosaic.version = 11 : i64} {
  func.func @conv1x1_sigmoid_kernel(%arg0: memref<1x96xbf16, #tpu.memory_space<vmem>>, %arg1: memref<96x2304xbf16, #tpu.memory_space<vmem>>, %arg2: memref<1x2304xf32, #tpu.memory_space<vmem>>, %arg3: memref<1x2304xf32, #tpu.memory_space<vmem>>) attributes {dimension_semantics = [], scalar_prefetch = 0 : i64, scratch_operands = 0 : i64, tpu.core_type = #tpu.core_type<tc>} {
    %c0 = arith.constant 0 : index
    %c0_0 = arith.constant 0 : index
    %0 = vector.load %arg0[%c0, %c0_0] : memref<1x96xbf16, #tpu.memory_space<vmem>>, vector<1x96xbf16>
    %c0_1 = arith.constant 0 : index
    %c0_2 = arith.constant 0 : index
    %1 = vector.load %arg1[%c0_1, %c0_2] : memref<96x2304xbf16, #tpu.memory_space<vmem>>, vector<96x2304xbf16>
    %cst = arith.constant dense<0.000000e+00> : vector<1x2304xf32>
    %2 = tpu.matmul %0, %1, %cst {dimension_numbers = #tpu.dot_dimension_numbers<[1], [0], [0], [1], [0, 0, 1, 1], [], []>} : vector<1x96xbf16>, vector<96x2304xbf16>, vector<1x2304xf32> -> vector<1x2304xf32>
    %c0_3 = arith.constant 0 : index
    %c0_4 = arith.constant 0 : index
    %3 = vector.load %arg2[%c0_3, %c0_4] : memref<1x2304xf32, #tpu.memory_space<vmem>>, vector<1x2304xf32>
    %4 = arith.addf %2, %3 : vector<1x2304xf32>
    %5 = arith.negf %4 : vector<1x2304xf32>
    %6 = math.exp %5 : vector<1x2304xf32>
    %cst_5 = arith.constant 1.000000e+00 : f32
    %7 = vector.broadcast %cst_5 : f32 to vector<1x2304xf32>
    %8 = arith.addf %7, %6 : vector<1x2304xf32>
    %9 = arith.divf %7, %8 : vector<1x2304xf32>
    %c0_6 = arith.constant 0 : index
    %c0_7 = arith.constant 0 : index
    %10 = vector.load %arg3[%c0_6, %c0_7] : memref<1x2304xf32, #tpu.memory_space<vmem>>, vector<1x2304xf32>
    tpu.vector_store %arg3[%c0_6, %c0_7], %9 {strides = array<i32>} : memref<1x2304xf32, #tpu.memory_space<vmem>>, vector<1x2304xf32>,
    return
  }
}

</mosaic_0001>

<llo_original>
// kernel: tpu_custom_call.1
$region0: #{tpu_custom_call.1}
  #allocation0 [shape = 'u32[]', space=smem, size = 0x4, offset = 0x4, fixed_abs, tag = 'smem constant byte address 0x4 - core index']
  #allocation1 [shape = 'u32[144,128]{1,0:T(1,128)}', space=vmem, size = 0x12000, scoped, tag = 'internal scratch']
  %s0 = inlined_call_operand.hbm [shape: bf16[1,96], index: 0, kind: input, shape index: {}]
  %s1 = inlined_call_operand.hbm [shape: bf16[96,2304], index: 1, kind: input, shape index: {}]
  %s2 = inlined_call_operand.hbm [shape: f32[1,2304], index: 2, kind: input, shape index: {}]
  %s3 = inlined_call_operand.hbm [shape: f32[1,2304], index: 3, kind: output, shape index: {}]
  %s4 = sld [smem:[#allocation0]]
  $region34: #{tpu_custom_call.1} parent=0
    _
  %s6 = ssub.s32 1, %s4
  %s7 = scalar_select 0, %s6, %s4
  $region1: #{tpu_custom_call.1} parent=0
    #allocation2 [shape = 'u8[512]{0}', space=vmem, size = 0x400, scoped, tag = 'input window, operand 0, single buffered']
    #allocation3 [shape = 's32[1]{0}', space=sflag, size = 0x4, scoped, tag = 'scoped memory for tpu_custom_call.1']
    #allocation4 [shape = 's32[1]{0}', space=sflag, size = 0x4, scoped, tag = 'scoped memory for tpu_custom_call.1']
    #allocation5 [shape = 'u8[442368]{0}', space=vmem, size = 0x6c000, scoped, tag = 'input window, operand 1, single buffered']
    #allocation6 [shape = 's32[1]{0}', space=sflag, size = 0x4, scoped, tag = 'scoped memory for tpu_custom_call.1']
    #allocation7 [shape = 'u8[9216]{0}', space=vmem, size = 0x2400, scoped, tag = 'input window, operand 2, single buffered']
    #allocation8 [shape = 'u8[9216]{0}', space=vmem, size = 0x2400, scoped, tag = 'output window, operand 0, single buffered']
    %8 = vsyncpa [#allocation3], 0
    %9 = vsyncpa [#allocation6], 0
    %10 = vsyncpa [#allocation4], 0
    // Predicated region
    $region2: #{tpu_custom_call.1} parent=1 // pred_check
      _
    $region3: #{tpu_custom_call.1} parent=1 // pred_check_branch
      %12 = sbr.rel (0) target = $region5
    $region4: #{tpu_custom_call.1} parent=1 // pred_region
      %s14 = ssub.s32 16, 16
      %15 = vsyncadd [#allocation3], %s14
      %s17 = sshll.u32 [#allocation2], 4
      %s18 = int_to_ptr.vmem [resolvable:$true] %s17
      %20 = dma.hbm_to_vmem [thread:$0]  %s0, 16, %s18, [#allocation3]
    $region5: #{tpu_custom_call.1} parent=1 // pred_fallthru
      _
    // Predicated region
    $region6: #{tpu_custom_call.1} parent=1 // pred_check
      _
    $region7: #{tpu_custom_call.1} parent=1 // pred_check_branch
      %22 = sbr.rel (0) target = $region9
    $region8: #{tpu_custom_call.1} parent=1 // pred_region
      %s24 = ssub.s32 13824, 13824
      %25 = vsyncadd [#allocation6], %s24
      %s26 = sshll.u32 [#allocation5], 4
      %s27 = int_to_ptr.vmem [resolvable:$true] %s26
      %32 = dma.hbm_to_vmem [thread:$0]  %s1, 13824, %s27, [#allocation6], 1152, 1152, 72
    $region9: #{tpu_custom_call.1} parent=1 // pred_fallthru
      _
    // Predicated region
    $region10: #{tpu_custom_call.1} parent=1 // pred_check
      _
    $region11: #{tpu_custom_call.1} parent=1 // pred_check_branch
      %34 = sbr.rel (0) target = $region13
    $region12: #{tpu_custom_call.1} parent=1 // pred_region
      %s36 = ssub.s32 288, 288
      %37 = vsyncadd [#allocation6], %s36
      %s39 = sshll.u32 [#allocation7], 4
      %s40 = int_to_ptr.vmem [resolvable:$true] %s39
      %42 = dma.hbm_to_vmem [thread:$0]  %s2, 288, %s40, [#allocation6]
    $region13: #{tpu_custom_call.1} parent=1 // pred_fallthru
      _
    // Predicated region
    $region14: #{tpu_custom_call.1} parent=1 // pred_check
      _
    $region15: #{tpu_custom_call.1} parent=1 // pred_check_branch
      %44 = sbr.rel (0) target = $region17
    $region16: #{tpu_custom_call.1} parent=1 // pred_region
      %45 = dma.done [#allocation3], 16
    $region17: #{tpu_custom_call.1} parent=1 // pred_fallthru
      _
    // Predicated region
    $region18: #{tpu_custom_call.1} parent=1 // pred_check
      _
    $region19: #{tpu_custom_call.1} parent=1 // pred_check_branch
      %47 = sbr.rel (0) target = $region21
    $region20: #{tpu_custom_call.1} parent=1 // pred_region
      %48 = dma.done [#allocation6], 13824
    $region21: #{tpu_custom_call.1} parent=1 // pred_fallthru
      _
    // Predicated region
    $region22: #{tpu_custom_call.1} parent=1 // pred_check
      _
    $region23: #{tpu_custom_call.1} parent=1 // pred_check_branch
      %50 = sbr.rel (0) target = $region25
    $region24: #{tpu_custom_call.1} parent=1 // pred_region
      %51 = dma.done [#allocation6], 288
    $region25: #{tpu_custom_call.1} parent=1 // pred_fallthru
      _
    %v53 = vld [vmem:[#allocation2] sm:$0x1]
    %v54 = vld [vmem:[#allocation5] sm:$0xff]
    %v55 = vld [vmem:[#allocation5 + $0x8] sm:$0xff]
    %v56 = vld [vmem:[#allocation5 + $0x10] sm:$0xff]
    %v57 = vld [vmem:[#allocation5 + $0x18] sm:$0xff]
    %v58 = vld [vmem:[#allocation5 + $0x20] sm:$0xff]
    %v59 = vld [vmem:[#allocation5 + $0x28] sm:$0xff]
    %v60 = vld [vmem:[#allocation5 + $0x30] sm:$0xff]
    %v61 = vld [vmem:[#allocation5 + $0x38] sm:$0xff]
    %v62 = vld [vmem:[#allocation5 + $0x40] sm:$0xff]
    %v63 = vld [vmem:[#allocation5 + $0x48] sm:$0xff]
    %v64 = vld [vmem:[#allocation5 + $0x50] sm:$0xff]
    %v65 = vld [vmem:[#allocation5 + $0x58] sm:$0xff]
    %v66 = vld [vmem:[#allocation5 + $0x60] sm:$0xff]
    %v67 = vld [vmem:[#allocation5 + $0x68] sm:$0xff]
    %v68 = vld [vmem:[#allocation5 + $0x70] sm:$0xff]
    %v69 = vld [vmem:[#allocation5 + $0x78] sm:$0xff]
    %v70 = vld [vmem:[#allocation5 + $0x80] sm:$0xff]
    %v71 = vld [vmem:[#allocation5 + $0x88] sm:$0xff]
    %v72 = vld [vmem:[#allocation5 + $0x90] sm:$0xff]
    %v73 = vld [vmem:[#allocation5 + $0x98] sm:$0xff]
    %v74 = vld [vmem:[#allocation5 + $0xa0] sm:$0xff]
    %v75 = vld [vmem:[#allocation5 + $0xa8] sm:$0xff]
    %v76 = vld [vmem:[#allocation5 + $0xb0] sm:$0xff]
    %v77 = vld [vmem:[#allocation5 + $0xb8] sm:$0xff]
    %v78 = vld [vmem:[#allocation5 + $0xc0] sm:$0xff]
    %v79 = vld [vmem:[#allocation5 + $0xc8] sm:$0xff]
    %v80 = vld [vmem:[#allocation5 + $0xd0] sm:$0xff]
    %v81 = vld [vmem:[#allocation5 + $0xd8] sm:$0xff]
    %v82 = vld [vmem:[#allocation5 + $0xe0] sm:$0xff]
    %v83 = vld [vmem:[#allocation5 + $0xe8] sm:$0xff]
    %v84 = vld [vmem:[#allocation5 + $0xf0] sm:$0xff]
    %v85 = vld [vmem:[#allocation5 + $0xf8] sm:$0xff]
    %v86 = vld [vmem:[#allocation5 + $0x100] sm:$0xff]
    %v87 = vld [vmem:[#allocation5 + $0x108] sm:$0xff]
    %v88 = vld [vmem:[#allocation5 + $0x110] sm:$0xff]
    %v89 = vld [vmem:[#allocation5 + $0x118] sm:$0xff]
    %v90 = vld [vmem:[#allocation5 + $0x120] sm:$0xff]
    %v91 = vld [vmem:[#allocation5 + $0x128] sm:$0xff]
    %v92 = vld [vmem:[#allocation5 + $0x130] sm:$0xff]
    %v93 = vld [vmem:[#allocation5 + $0x138] sm:$0xff]
    %v94 = vld [vmem:[#allocation5 + $0x140] sm:$0xff]
    %v95 = vld [vmem:[#allocation5 + $0x148] sm:$0xff]
    %v96 = vld [vmem:[#allocation5 + $0x150] sm:$0xff]
    %v97 = vld [vmem:[#allocation5 + $0x158] sm:$0xff]
    %v98 = vld [vmem:[#allocation5 + $0x160] sm:$0xff]
    %v99 = vld [vmem:[#allocation5 + $0x168] sm:$0xff]
    %v100 = vld [vmem:[#allocation5 + $0x170] sm:$0xff]
    %v101 = vld [vmem:[#allocation5 + $0x178] sm:$0xff]
    %v102 = vld [vmem:[#allocation5 + $0x180] sm:$0xff]
    %v103 = vld [vmem:[#allocation5 + $0x188] sm:$0xff]
    %v104 = vld [vmem:[#allocation5 + $0x190] sm:$0xff]
    %v105 = vld [vmem:[#allocation5 + $0x198] sm:$0xff]
    %v106 = vld [vmem:[#allocation5 + $0x1a0] sm:$0xff]
    %v107 = vld [vmem:[#allocation5 + $0x1a8] sm:$0xff]
    %v108 = vld [vmem:[#allocation5 + $0x1b0] sm:$0xff]
    %v109 = vld [vmem:[#allocation5 + $0x1b8] sm:$0xff]
    %v110 = vld [vmem:[#allocation5 + $0x1c0] sm:$0xff]
    %v111 = vld [vmem:[#allocation5 + $0x1c8] sm:$0xff]
    %v112 = vld [vmem:[#allocation5 + $0x1d0] sm:$0xff]
    %v113 = vld [vmem:[#allocation5 + $0x1d8] sm:$0xff]
    %v114 = vld [vmem:[#allocation5 + $0x1e0] sm:$0xff]
    %v115 = vld [vmem:[#allocation5 + $0x1e8] sm:$0xff]
    %v116 = vld [vmem:[#allocation5 + $0x1f0] sm:$0xff]
    %v117 = vld [vmem:[#allocation5 + $0x1f8] sm:$0xff]
    %v118 = vld [vmem:[#allocation5 + $0x200] sm:$0xff]
    %v119 = vld [vmem:[#allocation5 + $0x208] sm:$0xff]
    %v120 = vld [vmem:[#allocation5 + $0x210] sm:$0xff]
    %v121 = vld [vmem:[#allocation5 + $0x218] sm:$0xff]
    %v122 = vld [vmem:[#allocation5 + $0x220] sm:$0xff]
    %v123 = vld [vmem:[#allocation5 + $0x228] sm:$0xff]
    %v124 = vld [vmem:[#allocation5 + $0x230] sm:$0xff]
    %v125 = vld [vmem:[#allocation5 + $0x238] sm:$0xff]
    %v126 = vld [vmem:[#allocation5 + $0x240] sm:$0xff]
    %v127 = vld [vmem:[#allocation5 + $0x248] sm:$0xff]
    %v128 = vld [vmem:[#allocation5 + $0x250] sm:$0xff]
    %v129 = vld [vmem:[#allocation5 + $0x258] sm:$0xff]
    %v130 = vld [vmem:[#allocation5 + $0x260] sm:$0xff]
    %v131 = vld [vmem:[#allocation5 + $0x268] sm:$0xff]
    %v132 = vld [vmem:[#allocation5 + $0x270] sm:$0xff]
    %v133 = vld [vmem:[#allocation5 + $0x278] sm:$0xff]
    %v134 = vld [vmem:[#allocation5 + $0x280] sm:$0xff]
    %v135 = vld [vmem:[#allocation5 + $0x288] sm:$0xff]
    %v136 = vld [vmem:[#allocation5 + $0x290] sm:$0xff]
    %v137 = vld [vmem:[#allocation5 + $0x298] sm:$0xff]
    %v138 = vld [vmem:[#allocation5 + $0x2a0] sm:$0xff]
    %v139 = vld [vmem:[#allocation5 + $0x2a8] sm:$0xff]
    %v140 = vld [vmem:[#allocation5 + $0x2b0] sm:$0xff]
    %v141 = vld [vmem:[#allocation5 + $0x2b8] sm:$0xff]
    %v142 = vld [vmem:[#allocation5 + $0x2c0] sm:$0xff]
    %v143 = vld [vmem:[#allocation5 + $0x2c8] sm:$0xff]
    %v144 = vld [vmem:[#allocation5 + $0x2d0] sm:$0xff]
    %v145 = vld [vmem:[#allocation5 + $0x2d8] sm:$0xff]
    %v146 = vld [vmem:[#allocation5 + $0x2e0] sm:$0xff]
    %v147 = vld [vmem:[#allocation5 + $0x2e8] sm:$0xff]
    %v148 = vld [vmem:[#allocation5 + $0x2f0] sm:$0xff]
    %v149 = vld [vmem:[#allocation5 + $0x2f8] sm:$0xff]
    %v150 = vld [vmem:[#allocation5 + $0x300] sm:$0xff]
    %v151 = vld [vmem:[#allocation5 + $0x308] sm:$0xff]
    %v152 = vld [vmem:[#allocation5 + $0x310] sm:$0xff]
    %v153 = vld [vmem:[#allocation5 + $0x318] sm:$0xff]
    %v154 = vld [vmem:[#allocation5 + $0x320] sm:$0xff]
    %v155 = vld [vmem:[#allocation5 + $0x328] sm:$0xff]
    %v156 = vld [vmem:[#allocation5 + $0x330] sm:$0xff]
    %v157 = vld [vmem:[#allocation5 + $0x338] sm:$0xff]
    %v158 = vld [vmem:[#allocation5 + $0x340] sm:$0xff]
    %v159 = vld [vmem:[#allocation5 + $0x348] sm:$0xff]
    %v160 = vld [vmem:[#allocation5 + $0x350] sm:$0xff]
    %v161 = vld [vmem:[#allocation5 + $0x358] sm:$0xff]
    %v162 = vld [vmem:[#allocation7] sm:$0xff]
    %v163 = vld [vmem:[#allocation7 + $0x8] sm:$0xff]
    %v164 = vld [vmem:[#allocation7 + $0x10] sm:$0x3]
    %v273 = vunpack.c.l.b16 %v54
    %v274 = vunpack.c.h.b16 %v54
    %v275 = vunpack.c.l.b16 %v55
    %v276 = vunpack.c.h.b16 %v55
    %v277 = vunpack.c.l.b16 %v56
    %v278 = vunpack.c.h.b16 %v56
    %v279 = vunpack.c.l.b16 %v57
    %v280 = vunpack.c.h.b16 %v57
    %v281 = vunpack.c.l.b16 %v58
    %v282 = vunpack.c.h.b16 %v58
    %v283 = vunpack.c.l.b16 %v59
    %v284 = vunpack.c.h.b16 %v59
    %v285 = vunpack.c.l.b16 %v60
    %v286 = vunpack.c.h.b16 %v60
    %v287 = vunpack.c.l.b16 %v61
    %v288 = vunpack.c.h.b16 %v61
    %v289 = vunpack.c.l.b16 %v62
    %v290 = vunpack.c.h.b16 %v62
    %v291 = vunpack.c.l.b16 %v63
    %v292 = vunpack.c.h.b16 %v63
    %v293 = vunpack.c.l.b16 %v64
    %v294 = vunpack.c.h.b16 %v64
    %v295 = vunpack.c.l.b16 %v65
    %v296 = vunpack.c.h.b16 %v65
    %v297 = vunpack.c.l.b16 %v66
    %v298 = vunpack.c.h.b16 %v66
    %v299 = vunpack.c.l.b16 %v67
    %v300 = vunpack.c.h.b16 %v67
    %v301 = vunpack.c.l.b16 %v68
    %v302 = vunpack.c.h.b16 %v68
    %v303 = vunpack.c.l.b16 %v69
    %v304 = vunpack.c.h.b16 %v69
    %v305 = vunpack.c.l.b16 %v70
    %v306 = vunpack.c.h.b16 %v70
    %v307 = vunpack.c.l.b16 %v71
    %v308 = vunpack.c.h.b16 %v71
    %v309 = vunpack.c.l.b16 %v72
    %v310 = vunpack.c.h.b16 %v72
    %v311 = vunpack.c.l.b16 %v73
    %v312 = vunpack.c.h.b16 %v73
    %v313 = vunpack.c.l.b16 %v74
    %v314 = vunpack.c.h.b16 %v74
    %v315 = vunpack.c.l.b16 %v75
    %v316 = vunpack.c.h.b16 %v75
    %v317 = vunpack.c.l.b16 %v76
    %v318 = vunpack.c.h.b16 %v76
    %v319 = vunpack.c.l.b16 %v77
    %v320 = vunpack.c.h.b16 %v77
    %v321 = vunpack.c.l.b16 %v78
    %v322 = vunpack.c.h.b16 %v78
    %v323 = vunpack.c.l.b16 %v79
    %v324 = vunpack.c.h.b16 %v79
    %v325 = vunpack.c.l.b16 %v80
    %v326 = vunpack.c.h.b16 %v80
    %v327 = vunpack.c.l.b16 %v81
    %v328 = vunpack.c.h.b16 %v81
    %v329 = vunpack.c.l.b16 %v82
    %v330 = vunpack.c.h.b16 %v82
    %v331 = vunpack.c.l.b16 %v83
    %v332 = vunpack.c.h.b16 %v83
    %v333 = vunpack.c.l.b16 %v84
    %v334 = vunpack.c.h.b16 %v84
    %v335 = vunpack.c.l.b16 %v85
    %v336 = vunpack.c.h.b16 %v85
    %v337 = vunpack.c.l.b16 %v86
    %v338 = vunpack.c.h.b16 %v86
    %v339 = vunpack.c.l.b16 %v87
    %v340 = vunpack.c.h.b16 %v87
    %v341 = vunpack.c.l.b16 %v88
    %v342 = vunpack.c.h.b16 %v88
    %v343 = vunpack.c.l.b16 %v89
    %v344 = vunpack.c.h.b16 %v89
    %v345 = vunpack.c.l.b16 %v90
    %v346 = vunpack.c.h.b16 %v90
    %v347 = vunpack.c.l.b16 %v91
    %v348 = vunpack.c.h.b16 %v91
    %v349 = vunpack.c.l.b16 %v92
    %v350 = vunpack.c.h.b16 %v92
    %v351 = vunpack.c.l.b16 %v93
    %v352 = vunpack.c.h.b16 %v93
    %v353 = vunpack.c.l.b16 %v94
    %v354 = vunpack.c.h.b16 %v94
    %v355 = vunpack.c.l.b16 %v95
    %v356 = vunpack.c.h.b16 %v95
    %v357 = vunpack.c.l.b16 %v96
    %v358 = vunpack.c.h.b16 %v96
    %v359 = vunpack.c.l.b16 %v97
    %v360 = vunpack.c.h.b16 %v97
    %v361 = vunpack.c.l.b16 %v98
    %v362 = vunpack.c.h.b16 %v98
    %v363 = vunpack.c.l.b16 %v99
    %v364 = vunpack.c.h.b16 %v99
    %v365 = vunpack.c.l.b16 %v100
    %v366 = vunpack.c.h.b16 %v100
    %v367 = vunpack.c.l.b16 %v101
    %v368 = vunpack.c.h.b16 %v101
    %v369 = vunpack.c.l.b16 %v102
    %v370 = vunpack.c.h.b16 %v102
    %v371 = vunpack.c.l.b16 %v103
    %v372 = vunpack.c.h.b16 %v103
    %v373 = vunpack.c.l.b16 %v104
    %v374 = vunpack.c.h.b16 %v104
    %v375 = vunpack.c.l.b16 %v105
    %v376 = vunpack.c.h.b16 %v105
    %v377 = vunpack.c.l.b16 %v106
    %v378 = vunpack.c.h.b16 %v106
    %v379 = vunpack.c.l.b16 %v107
    %v380 = vunpack.c.h.b16 %v107
    %v381 = vunpack.c.l.b16 %v108
    %v382 = vunpack.c.h.b16 %v108
    %v383 = vunpack.c.l.b16 %v109
    %v384 = vunpack.c.h.b16 %v109
    %v385 = vunpack.c.l.b16 %v110
    %v386 = vunpack.c.h.b16 %v110
    %v387 = vunpack.c.l.b16 %v111
    %v388 = vunpack.c.h.b16 %v111
    %v389 = vunpack.c.l.b16 %v112
    %v390 = vunpack.c.h.b16 %v112
    %v391 = vunpack.c.l.b16 %v113
    %v392 = vunpack.c.h.b16 %v113
    %v393 = vunpack.c.l.b16 %v114
    %v394 = vunpack.c.h.b16 %v114
    %v395 = vunpack.c.l.b16 %v115
    %v396 = vunpack.c.h.b16 %v115
    %v397 = vunpack.c.l.b16 %v116
    %v398 = vunpack.c.h.b16 %v116
    %v399 = vunpack.c.l.b16 %v117
    %v400 = vunpack.c.h.b16 %v117
    %v401 = vunpack.c.l.b16 %v118
    %v402 = vunpack.c.h.b16 %v118
    %v403 = vunpack.c.l.b16 %v119
    %v404 = vunpack.c.h.b16 %v119
    %v405 = vunpack.c.l.b16 %v120
    %v406 = vunpack.c.h.b16 %v120
    %v407 = vunpack.c.l.b16 %v121
    %v408 = vunpack.c.h.b16 %v121
    %v409 = vunpack.c.l.b16 %v122
    %v410 = vunpack.c.h.b16 %v122
    %v411 = vunpack.c.l.b16 %v123
    %v412 = vunpack.c.h.b16 %v123
    %v413 = vunpack.c.l.b16 %v124
    %v414 = vunpack.c.h.b16 %v124
    %v415 = vunpack.c.l.b16 %v125
    %v416 = vunpack.c.h.b16 %v125
    %v417 = vunpack.c.l.b16 %v126
    %v418 = vunpack.c.h.b16 %v126
    %v419 = vunpack.c.l.b16 %v127
    %v420 = vunpack.c.h.b16 %v127
    %v421 = vunpack.c.l.b16 %v128
    %v422 = vunpack.c.h.b16 %v128
    %v423 = vunpack.c.l.b16 %v129
    %v424 = vunpack.c.h.b16 %v129
    %v425 = vunpack.c.l.b16 %v130
    %v426 = vunpack.c.h.b16 %v130
    %v427 = vunpack.c.l.b16 %v131
    %v428 = vunpack.c.h.b16 %v131
    %v429 = vunpack.c.l.b16 %v132
    %v430 = vunpack.c.h.b16 %v132
    %v431 = vunpack.c.l.b16 %v133
    %v432 = vunpack.c.h.b16 %v133
    %v433 = vunpack.c.l.b16 %v134
    %v434 = vunpack.c.h.b16 %v134
    %v435 = vunpack.c.l.b16 %v135
    %v436 = vunpack.c.h.b16 %v135
    %v437 = vunpack.c.l.b16 %v136
    %v438 = vunpack.c.h.b16 %v136
    %v439 = vunpack.c.l.b16 %v137
    %v440 = vunpack.c.h.b16 %v137
    %v441 = vunpack.c.l.b16 %v138
    %v442 = vunpack.c.h.b16 %v138
    %v443 = vunpack.c.l.b16 %v139
    %v444 = vunpack.c.h.b16 %v139
    %v445 = vunpack.c.l.b16 %v140
    %v446 = vunpack.c.h.b16 %v140
    %v447 = vunpack.c.l.b16 %v141
    %v448 = vunpack.c.h.b16 %v141
    %v449 = vunpack.c.l.b16 %v142
    %v450 = vunpack.c.h.b16 %v142
    %v451 = vunpack.c.l.b16 %v143
    %v452 = vunpack.c.h.b16 %v143
    %v453 = vunpack.c.l.b16 %v144
    %v454 = vunpack.c.h.b16 %v144
    %v455 = vunpack.c.l.b16 %v145
    %v456 = vunpack.c.h.b16 %v145
    %v457 = vunpack.c.l.b16 %v146
    %v458 = vunpack.c.h.b16 %v146
    %v459 = vunpack.c.l.b16 %v147
    %v460 = vunpack.c.h.b16 %v147
    %v461 = vunpack.c.l.b16 %v148
    %v462 = vunpack.c.h.b16 %v148
    %v463 = vunpack.c.l.b16 %v149
    %v464 = vunpack.c.h.b16 %v149
    %v465 = vunpack.c.l.b16 %v150
    %v466 = vunpack.c.h.b16 %v150
    %v467 = vunpack.c.l.b16 %v151
    %v468 = vunpack.c.h.b16 %v151
    %v469 = vunpack.c.l.b16 %v152
    %v470 = vunpack.c.h.b16 %v152
    %v471 = vunpack.c.l.b16 %v153
    %v472 = vunpack.c.h.b16 %v153
    %v473 = vunpack.c.l.b16 %v154
    %v474 = vunpack.c.h.b16 %v154
    %v475 = vunpack.c.l.b16 %v155
    %v476 = vunpack.c.h.b16 %v155
    %v477 = vunpack.c.l.b16 %v156
    %v478 = vunpack.c.h.b16 %v156
    %v479 = vunpack.c.l.b16 %v157
    %v480 = vunpack.c.h.b16 %v157
    %v481 = vunpack.c.l.b16 %v158
    %v482 = vunpack.c.h.b16 %v158
    %v483 = vunpack.c.l.b16 %v159
    %v484 = vunpack.c.h.b16 %v159
    %v485 = vunpack.c.l.b16 %v160
    %v486 = vunpack.c.h.b16 %v160
    %v487 = vunpack.c.l.b16 %v161
    %v488 = vunpack.c.h.b16 %v161
    %v489 = vpack.c.b16 %v291, %v273
    %v490 = vpack.c.b16 %v292, %v274
    %v491 = vpack.c.b16 %v293, %v275
    %v492 = vpack.c.b16 %v294, %v276
    %v493 = vpack.c.b16 %v295, %v277
    %v494 = vpack.c.b16 %v296, %v278
    %v495 = vpack.c.b16 %v297, %v279
    %v496 = vpack.c.b16 %v298, %v280
    %v497 = vpack.c.b16 %v299, %v281
    %v498 = vpack.c.b16 %v300, %v282
    %v499 = vpack.c.b16 %v301, %v283
    %v500 = vpack.c.b16 %v302, %v284
    %v501 = vpack.c.b16 %v303, %v285
    %v502 = vpack.c.b16 %v304, %v286
    %v503 = vpack.c.b16 %v305, %v287
    %v504 = vpack.c.b16 %v306, %v288
    %v505 = vpack.c.b16 %v307, %v289
    %v506 = vpack.c.b16 %v308, %v290
    %v507 = vpack.c.b16 %v327, %v309
    %v508 = vpack.c.b16 %v328, %v310
    %v509 = vpack.c.b16 %v329, %v311
    %v510 = vpack.c.b16 %v330, %v312
    %v511 = vpack.c.b16 %v331, %v313
    %v512 = vpack.c.b16 %v332, %v314
    %v513 = vpack.c.b16 %v333, %v315
    %v514 = vpack.c.b16 %v334, %v316
    %v515 = vpack.c.b16 %v335, %v317
    %v516 = vpack.c.b16 %v336, %v318
    %v517 = vpack.c.b16 %v337, %v319
    %v518 = vpack.c.b16 %v338, %v320
    %v519 = vpack.c.b16 %v339, %v321
    %v520 = vpack.c.b16 %v340, %v322
    %v521 = vpack.c.b16 %v341, %v323
    %v522 = vpack.c.b16 %v342, %v324
    %v523 = vpack.c.b16 %v343, %v325
    %v524 = vpack.c.b16 %v344, %v326
    %v525 = vpack.c.b16 %v363, %v345
    %v526 = vpack.c.b16 %v364, %v346
    %v527 = vpack.c.b16 %v365, %v347
    %v528 = vpack.c.b16 %v366, %v348
    %v529 = vpack.c.b16 %v367, %v349
    %v530 = vpack.c.b16 %v368, %v350
    %v531 = vpack.c.b16 %v369, %v351
    %v532 = vpack.c.b16 %v370, %v352
    %v533 = vpack.c.b16 %v371, %v353
    %v534 = vpack.c.b16 %v372, %v354
    %v535 = vpack.c.b16 %v373, %v355
    %v536 = vpack.c.b16 %v374, %v356
    %v537 = vpack.c.b16 %v375, %v357
    %v538 = vpack.c.b16 %v376, %v358
    %v539 = vpack.c.b16 %v377, %v359
    %v540 = vpack.c.b16 %v378, %v360
    %v541 = vpack.c.b16 %v379, %v361
    %v542 = vpack.c.b16 %v380, %v362
    %v543 = vpack.c.b16 %v399, %v381
    %v544 = vpack.c.b16 %v400, %v382
    %v545 = vpack.c.b16 %v401, %v383
    %v546 = vpack.c.b16 %v402, %v384
    %v547 = vpack.c.b16 %v403, %v385
    %v548 = vpack.c.b16 %v404, %v386
    %v549 = vpack.c.b16 %v405, %v387
    %v550 = vpack.c.b16 %v406, %v388
    %v551 = vpack.c.b16 %v407, %v389
    %v552 = vpack.c.b16 %v408, %v390
    %v553 = vpack.c.b16 %v409, %v391
    %v554 = vpack.c.b16 %v410, %v392
    %v555 = vpack.c.b16 %v411, %v393
    %v556 = vpack.c.b16 %v412, %v394
    %v557 = vpack.c.b16 %v413, %v395
    %v558 = vpack.c.b16 %v414, %v396
    %v559 = vpack.c.b16 %v415, %v397
    %v560 = vpack.c.b16 %v416, %v398
    %v561 = vpack.c.b16 %v435, %v417
    %v562 = vpack.c.b16 %v436, %v418
    %v563 = vpack.c.b16 %v437, %v419
    %v564 = vpack.c.b16 %v438, %v420
    %v565 = vpack.c.b16 %v439, %v421
    %v566 = vpack.c.b16 %v440, %v422
    %v567 = vpack.c.b16 %v441, %v423
    %v568 = vpack.c.b16 %v442, %v424
    %v569 = vpack.c.b16 %v443, %v425
    %v570 = vpack.c.b16 %v444, %v426
    %v571 = vpack.c.b16 %v445, %v427
    %v572 = vpack.c.b16 %v446, %v428
    %v573 = vpack.c.b16 %v447, %v429
    %v574 = vpack.c.b16 %v448, %v430
    %v575 = vpack.c.b16 %v449, %v431
    %v576 = vpack.c.b16 %v450, %v432
    %v577 = vpack.c.b16 %v451, %v433
    %v578 = vpack.c.b16 %v452, %v434
    %v579 = vpack.c.b16 %v471, %v453
    %v580 = vpack.c.b16 %v472, %v454
    %v581 = vpack.c.b16 %v473, %v455
    %v582 = vpack.c.b16 %v474, %v456
    %v583 = vpack.c.b16 %v475, %v457
    %v584 = vpack.c.b16 %v476, %v458
    %v585 = vpack.c.b16 %v477, %v459
    %v586 = vpack.c.b16 %v478, %v460
    %v587 = vpack.c.b16 %v479, %v461
    %v588 = vpack.c.b16 %v480, %v462
    %v589 = vpack.c.b16 %v481, %v463
    %v590 = vpack.c.b16 %v482, %v464
    %v591 = vpack.c.b16 %v483, %v465
    %v592 = vpack.c.b16 %v484, %v466
    %v593 = vpack.c.b16 %v485, %v467
    %v594 = vpack.c.b16 %v486, %v468
    %v595 = vpack.c.b16 %v487, %v469
    %v596 = vpack.c.b16 %v488, %v470
    %v708 = vlaneseq
    %v709 = vshrl.u32 %v708, 7
    %v710 = vsub.s32 0, %v709
    %v711 = vrot.slane %v162, %v710
    %v712 = vlaneseq
    %v713 = vshrl.u32 %v712, 7
    %v714 = vsub.s32 1, %v713
    %v715 = vrot.slane %v162, %v714
    %v716 = vlaneseq
    %v717 = vshrl.u32 %v716, 7
    %v718 = vsub.s32 2, %v717
    %v719 = vrot.slane %v162, %v718
    %v720 = vlaneseq
    %v721 = vshrl.u32 %v720, 7
    %v722 = vsub.s32 3, %v721
    %v723 = vrot.slane %v162, %v722
    %v724 = vlaneseq
    %v725 = vshrl.u32 %v724, 7
    %v726 = vsub.s32 4, %v725
    %v727 = vrot.slane %v162, %v726
    %v728 = vlaneseq
    %v729 = vshrl.u32 %v728, 7
    %v730 = vsub.s32 5, %v729
    %v731 = vrot.slane %v162, %v730
    %v732 = vlaneseq
    %v733 = vshrl.u32 %v732, 7
    %v734 = vsub.s32 6, %v733
    %v735 = vrot.slane %v162, %v734
    %v736 = vlaneseq
    %v737 = vshrl.u32 %v736, 7
    %v738 = vsub.s32 7, %v737
    %v739 = vrot.slane %v162, %v738
    %v740 = vlaneseq
    %v741 = vshrl.u32 %v740, 7
    %v742 = vsub.s32 0, %v741
    %v743 = vrot.slane %v163, %v742
    %v744 = vlaneseq
    %v745 = vshrl.u32 %v744, 7
    %v746 = vsub.s32 1, %v745
    %v747 = vrot.slane %v163, %v746
    %v748 = vlaneseq
    %v749 = vshrl.u32 %v748, 7
    %v750 = vsub.s32 2, %v749
    %v751 = vrot.slane %v163, %v750
    %v752 = vlaneseq
    %v753 = vshrl.u32 %v752, 7
    %v754 = vsub.s32 3, %v753
    %v755 = vrot.slane %v163, %v754
    %v756 = vlaneseq
    %v757 = vshrl.u32 %v756, 7
    %v758 = vsub.s32 4, %v757
    %v759 = vrot.slane %v163, %v758
    %v760 = vlaneseq
    %v761 = vshrl.u32 %v760, 7
    %v762 = vsub.s32 5, %v761
    %v763 = vrot.slane %v163, %v762
    %v764 = vlaneseq
    %v765 = vshrl.u32 %v764, 7
    %v766 = vsub.s32 6, %v765
    %v767 = vrot.slane %v163, %v766
    %v768 = vlaneseq
    %v769 = vshrl.u32 %v768, 7
    %v770 = vsub.s32 7, %v769
    %v771 = vrot.slane %v163, %v770
    %v772 = vlaneseq
    %v773 = vshrl.u32 %v772, 7
    %v774 = vsub.s32 0, %v773
    %v775 = vrot.slane %v164, %v774
    %v776 = vlaneseq
    %v777 = vshrl.u32 %v776, 7
    %v778 = vsub.s32 1, %v777
    %v779 = vrot.slane %v164, %v778
    %vm798 = vcmask 785408
    %v800 = vsel %vm798, %v53, 0
    %802 = vmatprep.subr.bf16.mxu0 %v490
    %803 = vmatpush1.bf16.msra.mxu0 %v489
    %804 = vmatprep.subr.bf16.mxu0 %v508
    %805 = vmatpush1.bf16.msra.mxu0 %v507
    %806 = vmatprep.subr.bf16.mxu0 %v526
    %807 = vmatpush1.bf16.msra.mxu0 %v525
    %808 = vmatprep.subr.bf16.mxu0 %v544
    %809 = vmatpush1.bf16.msra.mxu0 %v543
    %810 = vmatprep.subr.bf16.mxu0 %v562
    %811 = vmatpush1.bf16.msra.mxu0 %v561
    %812 = vmatprep.subr.bf16.mxu0 %v580
    %813 = vmatpush1.bf16.msra.mxu0 %v579
    %814 = vmatprep.subr.bf16.mxu0 0
    %815 = vmatpush1.bf16.msra.mxu0 0
    %816 = vmatprep.subr.bf16.mxu0 0
    %817 = vmatpush1.bf16.msra.mxu0 0
    %818 = vmatprep.subr.bf16.mxu0 0
    %819 = vmatpush1.bf16.msra.mxu0 0
    %820 = vmatprep.subr.bf16.mxu0 0
    %821 = vmatpush1.bf16.msra.mxu0 0
    %822 = vmatprep.subr.bf16.mxu0 0
    %823 = vmatpush1.bf16.msra.mxu0 0
    %824 = vmatprep.subr.bf16.mxu0 0
    %825 = vmatpush1.bf16.msra.mxu0 0
    %826 = vmatprep.subr.bf16.mxu0 0
    %827 = vmatpush1.bf16.msra.mxu0 0
    %828 = vmatprep.subr.bf16.mxu0 0
    %829 = vmatpush1.bf16.msra.mxu0 0
    %830 = vmatprep.subr.bf16.mxu0 0
    %831 = vmatpush1.bf16.msra.mxu0 0
    %832 = vmatprep.subr.bf16.mxu0 0
    %833 = vmatpush1.bf16.msra.mxu0 0
    %834 = vmatprep.mubr.bf16.mxu0 0
    %835 = vmatmul.mubr.bf16.gmra.mrb[0].mxu0 %v800
    %v836 = vpop.f32.mrb[0].mxu0
    %v837 = vadd.f32 %v711, %v836
    %v838 = vpop.f32.mrb[0].mxu0
    %v839 = vadd.f32 %v715, %v838
    %v840 = vpop.f32.mrb[0].mxu0
    %v841 = vpop.f32.mrb[0].mxu0
    %842 = vdwg.mxu0
    %843 = vmatprep.subr.bf16.mxu0 %v492
    %844 = vmatpush1.bf16.msra.mxu0 %v491
    %845 = vmatprep.subr.bf16.mxu0 %v510
    %846 = vmatpush1.bf16.msra.mxu0 %v509
    %847 = vmatprep.subr.bf16.mxu0 %v528
    %848 = vmatpush1.bf16.msra.mxu0 %v527
    %849 = vmatprep.subr.bf16.mxu0 %v546
    %850 = vmatpush1.bf16.msra.mxu0 %v545
    %851 = vmatprep.subr.bf16.mxu0 %v564
    %852 = vmatpush1.bf16.msra.mxu0 %v563
    %853 = vmatprep.subr.bf16.mxu0 %v582
    %854 = vmatpush1.bf16.msra.mxu0 %v581
    %855 = vmatprep.subr.bf16.mxu0 0
    %856 = vmatpush1.bf16.msra.mxu0 0
    %857 = vmatprep.subr.bf16.mxu0 0
    %858 = vmatpush1.bf16.msra.mxu0 0
    %859 = vmatprep.subr.bf16.mxu0 0
    %860 = vmatpush1.bf16.msra.mxu0 0
    %861 = vmatprep.subr.bf16.mxu0 0
    %862 = vmatpush1.bf16.msra.mxu0 0
    %863 = vmatprep.subr.bf16.mxu0 0
    %864 = vmatpush1.bf16.msra.mxu0 0
    %865 = vmatprep.subr.bf16.mxu0 0
    %866 = vmatpush1.bf16.msra.mxu0 0
    %867 = vmatprep.subr.bf16.mxu0 0
    %868 = vmatpush1.bf16.msra.mxu0 0
    %869 = vmatprep.subr.bf16.mxu0 0
    %870 = vmatpush1.bf16.msra.mxu0 0
    %871 = vmatprep.subr.bf16.mxu0 0
    %872 = vmatpush1.bf16.msra.mxu0 0
    %873 = vmatprep.subr.bf16.mxu0 0
    %874 = vmatpush1.bf16.msra.mxu0 0
    %875 = vmatprep.mubr.bf16.mxu0 0
    %876 = vmatmul.mubr.bf16.gmra.mrb[0].mxu0 %v800
    %v877 = vpop.f32.mrb[0].mxu0
    %v878 = vadd.f32 %v719, %v877
    %v879 = vpop.f32.mrb[0].mxu0
    %v880 = vadd.f32 %v723, %v879
    %v881 = vpop.f32.mrb[0].mxu0
    %v882 = vpop.f32.mrb[0].mxu0
    %883 = vdwg.mxu0
    %884 = vmatprep.subr.bf16.mxu0 %v494
    %885 = vmatpush1.bf16.msra.mxu0 %v493
    %886 = vmatprep.subr.bf16.mxu0 %v512
    %887 = vmatpush1.bf16.msra.mxu0 %v511
    %888 = vmatprep.subr.bf16.mxu0 %v530
    %889 = vmatpush1.bf16.msra.mxu0 %v529
    %890 = vmatprep.subr.bf16.mxu0 %v548
    %891 = vmatpush1.bf16.msra.mxu0 %v547
    %892 = vmatprep.subr.bf16.mxu0 %v566
    %893 = vmatpush1.bf16.msra.mxu0 %v565
    %894 = vmatprep.subr.bf16.mxu0 %v584
    %895 = vmatpush1.bf16.msra.mxu0 %v583
    %896 = vmatprep.subr.bf16.mxu0 0
    %897 = vmatpush1.bf16.msra.mxu0 0
    %898 = vmatprep.subr.bf16.mxu0 0
    %899 = vmatpush1.bf16.msra.mxu0 0
    %900 = vmatprep.subr.bf16.mxu0 0
    %901 = vmatpush1.bf16.msra.mxu0 0
    %902 = vmatprep.subr.bf16.mxu0 0
    %903 = vmatpush1.bf16.msra.mxu0 0
    %904 = vmatprep.subr.bf16.mxu0 0
    %905 = vmatpush1.bf16.msra.mxu0 0
    %906 = vmatprep.subr.bf16.mxu0 0
    %907 = vmatpush1.bf16.msra.mxu0 0
    %908 = vmatprep.subr.bf16.mxu0 0
    %909 = vmatpush1.bf16.msra.mxu0 0
    %910 = vmatprep.subr.bf16.mxu0 0
    %911 = vmatpush1.bf16.msra.mxu0 0
    %912 = vmatprep.subr.bf16.mxu0 0
    %913 = vmatpush1.bf16.msra.mxu0 0
    %914 = vmatprep.subr.bf16.mxu0 0
    %915 = vmatpush1.bf16.msra.mxu0 0
    %916 = vmatprep.mubr.bf16.mxu0 0
    %917 = vmatmul.mubr.bf16.gmra.mrb[0].mxu0 %v800
    %v918 = vpop.f32.mrb[0].mxu0
    %v919 = vadd.f32 %v727, %v918
    %v920 = vpop.f32.mrb[0].mxu0
    %v921 = vadd.f32 %v731, %v920
    %v922 = vpop.f32.mrb[0].mxu0
    %v923 = vpop.f32.mrb[0].mxu0
    %924 = vdwg.mxu0
    %925 = vmatprep.subr.bf16.mxu0 %v496
    %926 = vmatpush1.bf16.msra.mxu0 %v495
    %927 = vmatprep.subr.bf16.mxu0 %v514
    %928 = vmatpush1.bf16.msra.mxu0 %v513
    %929 = vmatprep.subr.bf16.mxu0 %v532
    %930 = vmatpush1.bf16.msra.mxu0 %v531
    %931 = vmatprep.subr.bf16.mxu0 %v550
    %932 = vmatpush1.bf16.msra.mxu0 %v549
    %933 = vmatprep.subr.bf16.mxu0 %v568
    %934 = vmatpush1.bf16.msra.mxu0 %v567
    %935 = vmatprep.subr.bf16.mxu0 %v586
    %936 = vmatpush1.bf16.msra.mxu0 %v585
    %937 = vmatprep.subr.bf16.mxu0 0
    %938 = vmatpush1.bf16.msra.mxu0 0
    %939 = vmatprep.subr.bf16.mxu0 0
    %940 = vmatpush1.bf16.msra.mxu0 0
    %941 = vmatprep.subr.bf16.mxu0 0
    %942 = vmatpush1.bf16.msra.mxu0 0
    %943 = vmatprep.subr.bf16.mxu0 0
    %944 = vmatpush1.bf16.msra.mxu0 0
    %945 = vmatprep.subr.bf16.mxu0 0
    %946 = vmatpush1.bf16.msra.mxu0 0
    %947 = vmatprep.subr.bf16.mxu0 0
    %948 = vmatpush1.bf16.msra.mxu0 0
    %949 = vmatprep.subr.bf16.mxu0 0
    %950 = vmatpush1.bf16.msra.mxu0 0
    %951 = vmatprep.subr.bf16.mxu0 0
    %952 = vmatpush1.bf16.msra.mxu0 0
    %953 = vmatprep.subr.bf16.mxu0 0
    %954 = vmatpush1.bf16.msra.mxu0 0
    %955 = vmatprep.subr.bf16.mxu0 0
    %956 = vmatpush1.bf16.msra.mxu0 0
    %957 = vmatprep.mubr.bf16.mxu0 0
    %958 = vmatmul.mubr.bf16.gmra.mrb[0].mxu0 %v800
    %v959 = vpop.f32.mrb[0].mxu0
    %v960 = vadd.f32 %v735, %v959
    %v961 = vpop.f32.mrb[0].mxu0
    %v962 = vadd.f32 %v739, %v961
    %v963 = vpop.f32.mrb[0].mxu0
    %v964 = vpop.f32.mrb[0].mxu0
    %965 = vdwg.mxu0
    %966 = vmatprep.subr.bf16.mxu0 %v498
    %967 = vmatpush1.bf16.msra.mxu0 %v497
    %968 = vmatprep.subr.bf16.mxu0 %v516
    %969 = vmatpush1.bf16.msra.mxu0 %v515
    %970 = vmatprep.subr.bf16.mxu0 %v534
    %971 = vmatpush1.bf16.msra.mxu0 %v533
    %972 = vmatprep.subr.bf16.mxu0 %v552
    %973 = vmatpush1.bf16.msra.mxu0 %v551
    %974 = vmatprep.subr.bf16.mxu0 %v570
    %975 = vmatpush1.bf16.msra.mxu0 %v569
    %976 = vmatprep.subr.bf16.mxu0 %v588
    %977 = vmatpush1.bf16.msra.mxu0 %v587
    %978 = vmatprep.subr.bf16.mxu0 0
    %979 = vmatpush1.bf16.msra.mxu0 0
    %980 = vmatprep.subr.bf16.mxu0 0
    %981 = vmatpush1.bf16.msra.mxu0 0
    %982 = vmatprep.subr.bf16.mxu0 0
    %983 = vmatpush1.bf16.msra.mxu0 0
    %984 = vmatprep.subr.bf16.mxu0 0
    %985 = vmatpush1.bf16.msra.mxu0 0
    %986 = vmatprep.subr.bf16.mxu0 0
    %987 = vmatpush1.bf16.msra.mxu0 0
    %988 = vmatprep.subr.bf16.mxu0 0
    %989 = vmatpush1.bf16.msra.mxu0 0
    %990 = vmatprep.subr.bf16.mxu0 0
    %991 = vmatpush1.bf16.msra.mxu0 0
    %992 = vmatprep.subr.bf16.mxu0 0
    %993 = vmatpush1.bf16.msra.mxu0 0
    %994 = vmatprep.subr.bf16.mxu0 0
    %995 = vmatpush1.bf16.msra.mxu0 0
    %996 = vmatprep.subr.bf16.mxu0 0
    %997 = vmatpush1.bf16.msra.mxu0 0
    %998 = vmatprep.mubr.bf16.mxu0 0
    %999 = vmatmul.mubr.bf16.gmra.mrb[0].mxu0 %v800
    %v1000 = vpop.f32.mrb[0].mxu0
    %v1001 = vadd.f32 %v743, %v1000
    %v1002 = vpop.f32.mrb[0].mxu0
    %v1003 = vadd.f32 %v747, %v1002
    %v1004 = vpop.f32.mrb[0].mxu0
    %v1005 = vpop.f32.mrb[0].mxu0
    %1006 = vdwg.mxu0
    %1007 = vmatprep.subr.bf16.mxu0 %v500
    %1008 = vmatpush1.bf16.msra.mxu0 %v499
    %1009 = vmatprep.subr.bf16.mxu0 %v518
    %1010 = vmatpush1.bf16.msra.mxu0 %v517
    %1011 = vmatprep.subr.bf16.mxu0 %v536
    %1012 = vmatpush1.bf16.msra.mxu0 %v535
    %1013 = vmatprep.subr.bf16.mxu0 %v554
    %1014 = vmatpush1.bf16.msra.mxu0 %v553
    %1015 = vmatprep.subr.bf16.mxu0 %v572
    %1016 = vmatpush1.bf16.msra.mxu0 %v571
    %1017 = vmatprep.subr.bf16.mxu0 %v590
    %1018 = vmatpush1.bf16.msra.mxu0 %v589
    %1019 = vmatprep.subr.bf16.mxu0 0
    %1020 = vmatpush1.bf16.msra.mxu0 0
    %1021 = vmatprep.subr.bf16.mxu0 0
    %1022 = vmatpush1.bf16.msra.mxu0 0
    %1023 = vmatprep.subr.bf16.mxu0 0
    %1024 = vmatpush1.bf16.msra.mxu0 0
    %1025 = vmatprep.subr.bf16.mxu0 0
    %1026 = vmatpush1.bf16.msra.mxu0 0
    %1027 = vmatprep.subr.bf16.mxu0 0
    %1028 = vmatpush1.bf16.msra.mxu0 0
    %1029 = vmatprep.subr.bf16.mxu0 0
    %1030 = vmatpush1.bf16.msra.mxu0 0
    %1031 = vmatprep.subr.bf16.mxu0 0
    %1032 = vmatpush1.bf16.msra.mxu0 0
    %1033 = vmatprep.subr.bf16.mxu0 0
    %1034 = vmatpush1.bf16.msra.mxu0 0
    %1035 = vmatprep.subr.bf16.mxu0 0
    %1036 = vmatpush1.bf16.msra.mxu0 0
    %1037 = vmatprep.subr.bf16.mxu0 0
    %1038 = vmatpush1.bf16.msra.mxu0 0
    %1039 = vmatprep.mubr.bf16.mxu0 0
    %1040 = vmatmul.mubr.bf16.gmra.mrb[0].mxu0 %v800
    %v1041 = vpop.f32.mrb[0].mxu0
    %v1042 = vadd.f32 %v751, %v1041
    %v1043 = vpop.f32.mrb[0].mxu0
    %v1044 = vadd.f32 %v755, %v1043
    %v1045 = vpop.f32.mrb[0].mxu0
    %v1046 = vpop.f32.mrb[0].mxu0
    %1047 = vdwg.mxu0
    %1048 = vmatprep.subr.bf16.mxu0 %v502
    %1049 = vmatpush1.bf16.msra.mxu0 %v501
    %1050 = vmatprep.subr.bf16.mxu0 %v520
    %1051 = vmatpush1.bf16.msra.mxu0 %v519
    %1052 = vmatprep.subr.bf16.mxu0 %v538
    %1053 = vmatpush1.bf16.msra.mxu0 %v537
    %1054 = vmatprep.subr.bf16.mxu0 %v556
    %1055 = vmatpush1.bf16.msra.mxu0 %v555
    %1056 = vmatprep.subr.bf16.mxu0 %v574
    %1057 = vmatpush1.bf16.msra.mxu0 %v573
    %1058 = vmatprep.subr.bf16.mxu0 %v592
    %1059 = vmatpush1.bf16.msra.mxu0 %v591
    %1060 = vmatprep.subr.bf16.mxu0 0
    %1061 = vmatpush1.bf16.msra.mxu0 0
    %1062 = vmatprep.subr.bf16.mxu0 0
    %1063 = vmatpush1.bf16.msra.mxu0 0
    %1064 = vmatprep.subr.bf16.mxu0 0
    %1065 = vmatpush1.bf16.msra.mxu0 0
    %1066 = vmatprep.subr.bf16.mxu0 0
    %1067 = vmatpush1.bf16.msra.mxu0 0
    %1068 = vmatprep.subr.bf16.mxu0 0
    %1069 = vmatpush1.bf16.msra.mxu0 0
    %1070 = vmatprep.subr.bf16.mxu0 0
    %1071 = vmatpush1.bf16.msra.mxu0 0
    %1072 = vmatprep.subr.bf16.mxu0 0
    %1073 = vmatpush1.bf16.msra.mxu0 0
    %1074 = vmatprep.subr.bf16.mxu0 0
    %1075 = vmatpush1.bf16.msra.mxu0 0
    %1076 = vmatprep.subr.bf16.mxu0 0
    %1077 = vmatpush1.bf16.msra.mxu0 0
    %1078 = vmatprep.subr.bf16.mxu0 0
    %1079 = vmatpush1.bf16.msra.mxu0 0
    %1080 = vmatprep.mubr.bf16.mxu0 0
    %1081 = vmatmul.mubr.bf16.gmra.mrb[0].mxu0 %v800
    %v1082 = vpop.f32.mrb[0].mxu0
    %v1083 = vadd.f32 %v759, %v1082
    %v1084 = vpop.f32.mrb[0].mxu0
    %v1085 = vadd.f32 %v763, %v1084
    %v1086 = vpop.f32.mrb[0].mxu0
    %v1087 = vpop.f32.mrb[0].mxu0
    %1088 = vdwg.mxu0
    %1089 = vmatprep.subr.bf16.mxu0 %v504
    %1090 = vmatpush1.bf16.msra.mxu0 %v503
    %1091 = vmatprep.subr.bf16.mxu0 %v522
    %1092 = vmatpush1.bf16.msra.mxu0 %v521
    %1093 = vmatprep.subr.bf16.mxu0 %v540
    %1094 = vmatpush1.bf16.msra.mxu0 %v539
    %1095 = vmatprep.subr.bf16.mxu0 %v558
    %1096 = vmatpush1.bf16.msra.mxu0 %v557
    %1097 = vmatprep.subr.bf16.mxu0 %v576
    %1098 = vmatpush1.bf16.msra.mxu0 %v575
    %1099 = vmatprep.subr.bf16.mxu0 %v594
    %1100 = vmatpush1.bf16.msra.mxu0 %v593
    %1101 = vmatprep.subr.bf16.mxu0 0
    %1102 = vmatpush1.bf16.msra.mxu0 0
    %1103 = vmatprep.subr.bf16.mxu0 0
    %1104 = vmatpush1.bf16.msra.mxu0 0
    %1105 = vmatprep.subr.bf16.mxu0 0
    %1106 = vmatpush1.bf16.msra.mxu0 0
    %1107 = vmatprep.subr.bf16.mxu0 0
    %1108 = vmatpush1.bf16.msra.mxu0 0
    %1109 = vmatprep.subr.bf16.mxu0 0
    %1110 = vmatpush1.bf16.msra.mxu0 0
    %1111 = vmatprep.subr.bf16.mxu0 0
    %1112 = vmatpush1.bf16.msra.mxu0 0
    %1113 = vmatprep.subr.bf16.mxu0 0
    %1114 = vmatpush1.bf16.msra.mxu0 0
    %1115 = vmatprep.subr.bf16.mxu0 0
    %1116 = vmatpush1.bf16.msra.mxu0 0
    %1117 = vmatprep.subr.bf16.mxu0 0
    %1118 = vmatpush1.bf16.msra.mxu0 0
    %1119 = vmatprep.subr.bf16.mxu0 0
    %1120 = vmatpush1.bf16.msra.mxu0 0
    %1121 = vmatprep.mubr.bf16.mxu0 0
    %1122 = vmatmul.mubr.bf16.gmra.mrb[0].mxu0 %v800
    %v1123 = vpop.f32.mrb[0].mxu0
    %v1124 = vadd.f32 %v767, %v1123
    %v1125 = vpop.f32.mrb[0].mxu0
    %v1126 = vadd.f32 %v771, %v1125
    %v1127 = vpop.f32.mrb[0].mxu0
    %v1128 = vpop.f32.mrb[0].mxu0
    %1129 = vdwg.mxu0
    %1130 = vmatprep.subr.bf16.mxu0 %v506
    %1131 = vmatpush1.bf16.msra.mxu0 %v505
    %1132 = vmatprep.subr.bf16.mxu0 %v524
    %1133 = vmatpush1.bf16.msra.mxu0 %v523
    %1134 = vmatprep.subr.bf16.mxu0 %v542
    %1135 = vmatpush1.bf16.msra.mxu0 %v541
    %1136 = vmatprep.subr.bf16.mxu0 %v560
    %1137 = vmatpush1.bf16.msra.mxu0 %v559
    %1138 = vmatprep.subr.bf16.mxu0 %v578
    %1139 = vmatpush1.bf16.msra.mxu0 %v577
    %1140 = vmatprep.subr.bf16.mxu0 %v596
    %1141 = vmatpush1.bf16.msra.mxu0 %v595
    %1142 = vmatprep.subr.bf16.mxu0 0
    %1143 = vmatpush1.bf16.msra.mxu0 0
    %1144 = vmatprep.subr.bf16.mxu0 0
    %1145 = vmatpush1.bf16.msra.mxu0 0
    %1146 = vmatprep.subr.bf16.mxu0 0
    %1147 = vmatpush1.bf16.msra.mxu0 0
    %1148 = vmatprep.subr.bf16.mxu0 0
    %1149 = vmatpush1.bf16.msra.mxu0 0
    %1150 = vmatprep.subr.bf16.mxu0 0
    %1151 = vmatpush1.bf16.msra.mxu0 0
    %1152 = vmatprep.subr.bf16.mxu0 0
    %1153 = vmatpush1.bf16.msra.mxu0 0
    %1154 = vmatprep.subr.bf16.mxu0 0
    %1155 = vmatpush1.bf16.msra.mxu0 0
    %1156 = vmatprep.subr.bf16.mxu0 0
    %1157 = vmatpush1.bf16.msra.mxu0 0
    %1158 = vmatprep.subr.bf16.mxu0 0
    %1159 = vmatpush1.bf16.msra.mxu0 0
    %1160 = vmatprep.subr.bf16.mxu0 0
    %1161 = vmatpush1.bf16.msra.mxu0 0
    %1162 = vmatprep.mubr.bf16.mxu0 0
    %1163 = vmatmul.mubr.bf16.gmra.mrb[0].mxu0 %v800
    %v1164 = vpop.f32.mrb[0].mxu0
    %v1165 = vadd.f32 %v775, %v1164
    %v1166 = vpop.f32.mrb[0].mxu0
    %v1167 = vadd.f32 %v779, %v1166
    %v1168 = vpop.f32.mrb[0].mxu0
    %v1169 = vpop.f32.mrb[0].mxu0
    %1170 = vdwg.mxu0
    %v1171 = vxor.u32 %v837, 2147483648
    %v1172 = vxor.u32 %v839, 2147483648
    %v1173 = vxor.u32 %v878, 2147483648
    %v1174 = vxor.u32 %v880, 2147483648
    %v1175 = vxor.u32 %v919, 2147483648
    %v1176 = vxor.u32 %v921, 2147483648
    %v1177 = vxor.u32 %v960, 2147483648
    %v1178 = vxor.u32 %v962, 2147483648
    %v1179 = vxor.u32 %v1001, 2147483648
    %v1180 = vxor.u32 %v1003, 2147483648
    %v1181 = vxor.u32 %v1042, 2147483648
    %v1182 = vxor.u32 %v1044, 2147483648
    %v1183 = vxor.u32 %v1083, 2147483648
    %v1184 = vxor.u32 %v1085, 2147483648
    %v1185 = vxor.u32 %v1124, 2147483648
    %v1186 = vxor.u32 %v1126, 2147483648
    %v1187 = vxor.u32 %v1165, 2147483648
    %v1188 = vxor.u32 %v1167, 2147483648
    %v1189 = vmul.f32 %v1171, 1.442695
    %v1190 = vpow.pop %v1189
    %v1191 = vmul.f32 %v1172, 1.442695
    %v1192 = vpow.pop %v1191
    %v1193 = vmul.f32 %v1173, 1.442695
    %v1194 = vpow.pop %v1193
    %v1195 = vmul.f32 %v1174, 1.442695
    %v1196 = vpow.pop %v1195
    %v1197 = vmul.f32 %v1175, 1.442695
    %v1198 = vpow.pop %v1197
    %v1199 = vmul.f32 %v1176, 1.442695
    %v1200 = vpow.pop %v1199
    %v1201 = vmul.f32 %v1177, 1.442695
    %v1202 = vpow.pop %v1201
    %v1203 = vmul.f32 %v1178, 1.442695
    %v1204 = vpow.pop %v1203
    %v1205 = vmul.f32 %v1179, 1.442695
    %v1206 = vpow.pop %v1205
    %v1207 = vmul.f32 %v1180, 1.442695
    %v1208 = vpow.pop %v1207
    %v1209 = vmul.f32 %v1181, 1.442695
    %v1210 = vpow.pop %v1209
    %v1211 = vmul.f32 %v1182, 1.442695
    %v1212 = vpow.pop %v1211
    %v1213 = vmul.f32 %v1183, 1.442695
    %v1214 = vpow.pop %v1213
    %v1215 = vmul.f32 %v1184, 1.442695
    %v1216 = vpow.pop %v1215
    %v1217 = vmul.f32 %v1185, 1.442695
    %v1218 = vpow.pop %v1217
    %v1219 = vmul.f32 %v1186, 1.442695
    %v1220 = vpow.pop %v1219
    %v1221 = vmul.f32 %v1187, 1.442695
    %v1222 = vpow.pop %v1221
    %v1223 = vmul.f32 %v1188, 1.442695
    %v1224 = vpow.pop %v1223
    %v1225 = vadd.f32 %v1190, 1.0
    %v1226 = vadd.f32 %v1192, 1.0
    %v1227 = vadd.f32 %v1194, 1.0
    %v1228 = vadd.f32 %v1196, 1.0
    %v1229 = vadd.f32 %v1198, 1.0
    %v1230 = vadd.f32 %v1200, 1.0
    %v1231 = vadd.f32 %v1202, 1.0
    %v1232 = vadd.f32 %v1204, 1.0
    %v1233 = vadd.f32 %v1206, 1.0
    %v1234 = vadd.f32 %v1208, 1.0
    %v1235 = vadd.f32 %v1210, 1.0
    %v1236 = vadd.f32 %v1212, 1.0
    %v1237 = vadd.f32 %v1214, 1.0
    %v1238 = vadd.f32 %v1216, 1.0
    %v1239 = vadd.f32 %v1218, 1.0
    %v1240 = vadd.f32 %v1220, 1.0
    %v1241 = vadd.f32 %v1222, 1.0
    %v1242 = vadd.f32 %v1224, 1.0
    %v1243 = vrcp.pop %v1225
    %v1244 = vmul.f32 1.0, %v1243
    %v1245 = vrcp.pop %v1226
    %v1246 = vmul.f32 1.0, %v1245
    %v1247 = vrcp.pop %v1227
    %v1248 = vmul.f32 1.0, %v1247
    %v1249 = vrcp.pop %v1228
    %v1250 = vmul.f32 1.0, %v1249
    %v1251 = vrcp.pop %v1229
    %v1252 = vmul.f32 1.0, %v1251
    %v1253 = vrcp.pop %v1230
    %v1254 = vmul.f32 1.0, %v1253
    %v1255 = vrcp.pop %v1231
    %v1256 = vmul.f32 1.0, %v1255
    %v1257 = vrcp.pop %v1232
    %v1258 = vmul.f32 1.0, %v1257
    %v1259 = vrcp.pop %v1233
    %v1260 = vmul.f32 1.0, %v1259
    %v1261 = vrcp.pop %v1234
    %v1262 = vmul.f32 1.0, %v1261
    %v1263 = vrcp.pop %v1235
    %v1264 = vmul.f32 1.0, %v1263
    %v1265 = vrcp.pop %v1236
    %v1266 = vmul.f32 1.0, %v1265
    %v1267 = vrcp.pop %v1237
    %v1268 = vmul.f32 1.0, %v1267
    %v1269 = vrcp.pop %v1238
    %v1270 = vmul.f32 1.0, %v1269
    %v1271 = vrcp.pop %v1239
    %v1272 = vmul.f32 1.0, %v1271
    %v1273 = vrcp.pop %v1240
    %v1274 = vmul.f32 1.0, %v1273
    %v1275 = vrcp.pop %v1241
    %v1276 = vmul.f32 1.0, %v1275
    %v1277 = vrcp.pop %v1242
    %v1278 = vmul.f32 1.0, %v1277
    %v1297 = vcombine.low %v1244, %v1246
    %v1298 = vcombine.low %v1248, %v1250
    %v1299 = vcombine.low %v1252, %v1254
    %v1300 = vcombine.low %v1256, %v1258
    %v1302 = vunpack.c.l.s4 1966171168
    %v1303 = vunpack.c.0.s8 %v1302
    %v1304 = vlaneseq
    %v1305 = vshrl.u32 %v1304, 7
    %v1306 = vsub.s32 %v1303, %v1305
    %v1307 = vrot.slane %v1297, %v1306
    %v1309 = vunpack.c.l.s4 1966171168
    %v1310 = vunpack.c.0.s8 %v1309
    %v1311 = vlaneseq
    %v1312 = vshrl.u32 %v1311, 7
    %v1313 = vsub.s32 %v1310, %v1312
    %v1314 = vrot.slane %v1298, %v1313
    %v1316 = vunpack.c.l.s4 1966171168
    %v1317 = vunpack.c.0.s8 %v1316
    %v1318 = vlaneseq
    %v1319 = vshrl.u32 %v1318, 7
    %v1320 = vsub.s32 %v1317, %v1319
    %v1321 = vrot.slane %v1299, %v1320
    %v1323 = vunpack.c.l.s4 1966171168
    %v1324 = vunpack.c.0.s8 %v1323
    %v1325 = vlaneseq
    %v1326 = vshrl.u32 %v1325, 7
    %v1327 = vsub.s32 %v1324, %v1326
    %v1328 = vrot.slane %v1300, %v1327
    %v1329 = vcombine.low %v1307, %v1314
    %v1330 = vcombine.low %v1321, %v1328
    %v1332 = vunpack.c.l.s4 1966171168
    %v1333 = vunpack.c.0.s8 %v1332
    %v1334 = vlaneseq
    %v1335 = vshrl.u32 %v1334, 7
    %v1336 = vsub.s32 %v1333, %v1335
    %v1337 = vrot.slane %v1329, %v1336
    %v1339 = vunpack.c.l.s4 1966171168
    %v1340 = vunpack.c.0.s8 %v1339
    %v1341 = vlaneseq
    %v1342 = vshrl.u32 %v1341, 7
    %v1343 = vsub.s32 %v1340, %v1342
    %v1344 = vrot.slane %v1330, %v1343
    %v1345 = vcombine.low %v1337, %v1344
    %v1346 = vcombine.low %v1260, %v1262
    %v1347 = vcombine.low %v1264, %v1266
    %v1348 = vcombine.low %v1268, %v1270
    %v1349 = vcombine.low %v1272, %v1274
    %v1351 = vunpack.c.l.s4 1966171168
    %v1352 = vunpack.c.0.s8 %v1351
    %v1353 = vlaneseq
    %v1354 = vshrl.u32 %v1353, 7
    %v1355 = vsub.s32 %v1352, %v1354
    %v1356 = vrot.slane %v1346, %v1355
    %v1358 = vunpack.c.l.s4 1966171168
    %v1359 = vunpack.c.0.s8 %v1358
    %v1360 = vlaneseq
    %v1361 = vshrl.u32 %v1360, 7
    %v1362 = vsub.s32 %v1359, %v1361
    %v1363 = vrot.slane %v1347, %v1362
    %v1365 = vunpack.c.l.s4 1966171168
    %v1366 = vunpack.c.0.s8 %v1365
    %v1367 = vlaneseq
    %v1368 = vshrl.u32 %v1367, 7
    %v1369 = vsub.s32 %v1366, %v1368
    %v1370 = vrot.slane %v1348, %v1369
    %v1372 = vunpack.c.l.s4 1966171168
    %v1373 = vunpack.c.0.s8 %v1372
    %v1374 = vlaneseq
    %v1375 = vshrl.u32 %v1374, 7
    %v1376 = vsub.s32 %v1373, %v1375
    %v1377 = vrot.slane %v1349, %v1376
    %v1378 = vcombine.low %v1356, %v1363
    %v1379 = vcombine.low %v1370, %v1377
    %v1381 = vunpack.c.l.s4 1966171168
    %v1382 = vunpack.c.0.s8 %v1381
    %v1383 = vlaneseq
    %v1384 = vshrl.u32 %v1383, 7
    %v1385 = vsub.s32 %v1382, %v1384
    %v1386 = vrot.slane %v1378, %v1385
    %v1388 = vunpack.c.l.s4 1966171168
    %v1389 = vunpack.c.0.s8 %v1388
    %v1390 = vlaneseq
    %v1391 = vshrl.u32 %v1390, 7
    %v1392 = vsub.s32 %v1389, %v1391
    %v1393 = vrot.slane %v1379, %v1392
    %v1394 = vcombine.low %v1386, %v1393
    %v1395 = vcombine.low %v1276, %v1278
    %v1397 = vunpack.c.l.s4 1966171168
    %v1398 = vunpack.c.0.s8 %v1397
    %v1399 = vlaneseq
    %v1400 = vshrl.u32 %v1399, 7
    %v1401 = vsub.s32 %v1398, %v1400
    %v1402 = vrot.slane %v1395, %v1401
    %v1404 = vunpack.c.l.s4 1966171168
    %v1405 = vunpack.c.0.s8 %v1404
    %v1406 = vlaneseq
    %v1407 = vshrl.u32 %v1406, 7
    %v1408 = vsub.s32 %v1405, %v1407
    %v1409 = vrot.slane %v1402, %v1408
    %1413 = vst [vmem:[#allocation8] sm:$0xff] %v1345
    %1414 = vst [vmem:[#allocation8 + $0x8] sm:$0xff] %v1394
    %v1415 = vlaneseq
    %vm1416 = vcmp.ge.s32.totalorder %v1415, 0
    %vm1417 = vcmp.lt.s32.totalorder %v1415, 256
    %vm1418 = vmand %vm1416, %vm1417
    %1419 = vst.msk [vmem:[#allocation8 + $0x10] sm:$0x3] %vm1418, %v1409
    // Predicated region
    $region26: #{tpu_custom_call.1} parent=1 // pred_check
      _
    $region27: #{tpu_custom_call.1} parent=1 // pred_check_branch
      %1421 = sbr.rel (0) target = $region29
    $region28: #{tpu_custom_call.1} parent=1 // pred_region
      %s1423 = ssub.s32 288, 288
      %1424 = vsyncadd [#allocation4], %s1423
      %s1426 = sshll.u32 [#allocation8], 4
      %s1427 = int_to_ptr.vmem [resolvable:$true] %s1426
      %1429 = dma.vmem_to_hbm [thread:$0]  %s1427, 288, %s3, [#allocation4]
    $region29: #{tpu_custom_call.1} parent=1 // pred_fallthru
      _
    // Predicated region
    $region30: #{tpu_custom_call.1} parent=1 // pred_check
      _
    $region31: #{tpu_custom_call.1} parent=1 // pred_check_branch
      %1431 = sbr.rel (0) target = $region33
    $region32: #{tpu_custom_call.1} parent=1 // pred_region
      %1432 = dma.done [#allocation4], 288
    $region33: #{tpu_custom_call.1} parent=1 // pred_fallthru
      _
    %1433 = vsyncpa [#allocation3], 1
    %1434 = vsyncpa [#allocation6], 1
    %1435 = vsyncpa [#allocation4], 1

</llo_original>
